<compile_context>
chip_gen: v7x
topology: tpu7x:2x2x1
jax: 0.10.0
libtpu: 0.0.40
codegen_flags: <defaults>
</compile_context>

<pallas_src>
import jax
import jax.numpy as jnp
from jax.experimental import pallas as pl
from jax.experimental.pallas import tpu as pltpu


def _normalization_kernel(scale_ref, bias_ref, img_ref, out_ref):
    # scale_ref / bias_ref: (Rb, 1) f32 blocks of per-(n,c)-plane stats,
    #                       resident across the inner (lane) grid axis.
    # img_ref   / out_ref : (Rb, Lb) tiles of the flattened image.
    x = img_ref[...].astype(jnp.float32)
    out_ref[...] = (x * scale_ref[...] + bias_ref[...]).astype(out_ref.dtype)


def normalization(img, mean, std, *, target_block_bytes=8 << 20):
    """(img - mean[:, None, None]) / std[:, None, None] for NCHW `img`.

    Implemented as img * scale + bias with scale = 1/std, bias = -mean/std
    (computed in f32) over a lane-dense (N*C, H*W) view of the image.
    Integer images are promoted to float32 output (PyTorch promotion rules).
    """
    N, C, H, W = img.shape
    R, L = N * C, H * W

    in_dtype = jnp.dtype(img.dtype)
    # PyTorch's (int_img - float_mean) / float_std promotes to float.
    out_dtype = img.dtype if jnp.issubdtype(in_dtype, jnp.floating) else jnp.float32
    itemsize = max(in_dtype.itemsize, jnp.dtype(out_dtype).itemsize)

    # Per-channel stats in f32, rewritten so the kernel is a pure mul+add.
    mean32 = jnp.asarray(mean, dtype=jnp.float32).reshape(C)
    std32 = jnp.asarray(std, dtype=jnp.float32).reshape(C)
    scale_c = 1.0 / std32                      # (C,)
    bias_c = -mean32 / std32                   # (C,)
    # One row per (n, c) plane, broadcastable along the lane (H*W) dim.
    scale = jnp.broadcast_to(scale_c[None, :], (N, C)).reshape(R, 1)
    bias = jnp.broadcast_to(bias_c[None, :], (N, C)).reshape(R, 1)

    # Lane-dense flattened view (contiguous reshape, no data movement).
    img2d = img.reshape(R, L)

    # ---- Block selection (byte budget, dtype independent step count) ----
    # Lane block: either the full lane extent (always a legal block dim) or a
    # multiple-of-128 cap; the ragged tail is handled by the cdiv grid, never
    # by falling back to a huge full-dimension block.
    LANE_CAP = 32768  # multiple of 128
    lane_block = L if L <= LANE_CAP else LANE_CAP

    # Row block: multiple of 8 fitting ~target_block_bytes, or the full R.
    row_budget = max(8, (target_block_bytes // itemsize) // max(lane_block, 1))
    row_budget = max(8, (row_budget // 8) * 8)
    row_block = R if R <= row_budget else row_budget

    # Best-effort megacore balance: if everything landed in a single block but
    # the tensor is big enough to matter, split one axis so a v7x's two
    # TensorCores both get work (harmless extra step on single-TC chips).
    total_bytes = R * L * itemsize
    if R <= row_block and L <= lane_block and total_bytes > (2 << 20):
        if lane_block >= 256 and lane_block % 256 == 0:
            lane_block //= 2
        elif row_block >= 16 and row_block % 16 == 0:
            row_block //= 2

    grid = (pl.cdiv(R, row_block), pl.cdiv(L, lane_block))

    # NOTE: keep the lane axis (j) as the innermost grid axis and keep the
    # scale/bias index_maps dependent on i only: the (Rb, 1) stats blocks are
    # then fetched once per row stripe and stay resident across the inner
    # loop; the (Rb,1)->(Rb,Lb) broadcast is free VPU work under the HBM bound.
    grid_spec = pl.GridSpec(
        grid=grid,
        in_specs=[
            pl.BlockSpec((row_block, 1), lambda i, j: (i, 0)),            # scale
            pl.BlockSpec((row_block, 1), lambda i, j: (i, 0)),            # bias
            pl.BlockSpec((row_block, lane_block), lambda i, j: (i, j)),   # img
        ],
        out_specs=pl.BlockSpec((row_block, lane_block), lambda i, j: (i, j)),
    )

    cost = pl.CostEstimate(
        flops=2 * R * L,
        transcendentals=0,
        bytes_accessed=R * L * (in_dtype.itemsize + jnp.dtype(out_dtype).itemsize)
        + 2 * R * 4,
    )

    out2d = pl.pallas_call(
        _normalization_kernel,
        out_shape=jax.ShapeDtypeStruct((R, L), out_dtype),
        grid_spec=grid_spec,
        compiler_params=pltpu.CompilerParams(
            dimension_semantics=("parallel", "parallel"),
            # ~32 MiB live (2 in + 2 out x 8 MiB) fits under this on all of
            # v5e/v6e (128 MiB physical) and v7x (64 MiB physical).
            vmem_limit_bytes=48 * 1024 * 1024,
        ),
        cost_estimate=cost,
    )(scale, bias, img2d)

    return out2d.reshape(N, C, H, W)


if __name__ == "__main__":
    key = jax.random.PRNGKey(0)

    # Primary check: small ImageNet-style normalization.
    N, C, H, W = 2, 4, 16, 16
    img = jax.random.normal(key, (N, C, H, W), dtype=jnp.float32)
    mean = jnp.array([0.485, 0.456, 0.406, 0.5], dtype=jnp.float32)
    std = jnp.array([0.229, 0.224, 0.225, 0.25], dtype=jnp.float32)

    out = normalization(img, mean, std)
    out = jax.block_until_ready(out)
    ref = (img - mean[None, :, None, None]) / std[None, :, None, None]
    assert out.shape == (N, C, H, W)
    assert jnp.allclose(out, ref, atol=1e-5, rtol=1e-5)

    # Secondary check: ragged row blocks (R=20 not divisible by the 8-row
    # block forced via a tiny byte budget) exercise the cdiv/masked-tail path.
    N2, C2 = 5, 4
    img2 = jax.random.normal(jax.random.PRNGKey(1), (N2, C2, H, W), dtype=jnp.float32)
    out2 = normalization(img2, mean, std, target_block_bytes=8 * 1024)
    out2 = jax.block_until_ready(out2)
    ref2 = (img2 - mean[None, :, None, None]) / std[None, :, None, None]
    assert jnp.allclose(out2, ref2, atol=1e-5, rtol=1e-5)

    print("KERNEL_OK")
</pallas_src>

<mosaic_0001>
module attributes {stable_mosaic.version = 11 : i64} {
  func.func @_normalization_kernel(%arg0: i32, %arg1: i32, %arg2: memref<8x1xf32, #tpu.memory_space<vmem>>, %arg3: memref<8x1xf32, #tpu.memory_space<vmem>>, %arg4: memref<8x256xf32, #tpu.memory_space<vmem>>, %arg5: memref<8x256xf32, #tpu.memory_space<vmem>>) attributes {dimension_semantics = [#tpu.dimension_semantics<parallel>, #tpu.dimension_semantics<parallel>], iteration_bounds = array<i64: 1, 1>, scalar_prefetch = 0 : i64, scratch_operands = 0 : i64, tpu.core_type = #tpu.core_type<tc>, window_params = [{transform_indices = @transform_0, window_bounds = array<i64: 8, 1>}, {transform_indices = @transform_1, window_bounds = array<i64: 8, 1>}, {transform_indices = @transform_2, window_bounds = array<i64: 8, 256>}, {transform_indices = @transform_3, window_bounds = array<i64: 8, 256>}]} {
    %c0 = arith.constant 0 : index
    %c0_0 = arith.constant 0 : index
    %0 = vector.load %arg4[%c0, %c0_0] : memref<8x256xf32, #tpu.memory_space<vmem>>, vector<8x256xf32>
    %c0_1 = arith.constant 0 : index
    %c0_2 = arith.constant 0 : index
    %1 = vector.load %arg2[%c0_1, %c0_2] : memref<8x1xf32, #tpu.memory_space<vmem>>, vector<8x1xf32>
    %2 = vector.broadcast %1 : vector<8x1xf32> to vector<8x256xf32>
    %3 = arith.mulf %0, %2 : vector<8x256xf32>
    %c0_3 = arith.constant 0 : index
    %c0_4 = arith.constant 0 : index
    %4 = vector.load %arg3[%c0_3, %c0_4] : memref<8x1xf32, #tpu.memory_space<vmem>>, vector<8x1xf32>
    %5 = vector.broadcast %4 : vector<8x1xf32> to vector<8x256xf32>
    %6 = arith.addf %3, %5 : vector<8x256xf32>
    %c0_5 = arith.constant 0 : index
    %c0_6 = arith.constant 0 : index
    %7 = vector.load %arg5[%c0_5, %c0_6] : memref<8x256xf32, #tpu.memory_space<vmem>>, vector<8x256xf32>
    tpu.vector_store %arg5[%c0_5, %c0_6], %6 {strides = array<i32>} : memref<8x256xf32, #tpu.memory_space<vmem>>, vector<8x256xf32>,
    return
  }
  func.func @transform_0(%arg0: i32, %arg1: i32) -> (i32, i32) {
    %c0_i32 = arith.constant 0 : i32
    %c0_i32_0 = arith.constant 0 : i32
    return %arg0, %c0_i32 : i32, i32
  }
  func.func @transform_1(%arg0: i32, %arg1: i32) -> (i32, i32) {
    %c0_i32 = arith.constant 0 : i32
    %c0_i32_0 = arith.constant 0 : i32
    return %arg0, %c0_i32 : i32, i32
  }
  func.func @transform_2(%arg0: i32, %arg1: i32) -> (i32, i32) {
    %c0_i32 = arith.constant 0 : i32
    return %arg0, %arg1 : i32, i32
  }
  func.func @transform_3(%arg0: i32, %arg1: i32) -> (i32, i32) {
    %c0_i32 = arith.constant 0 : i32
    return %arg0, %arg1 : i32, i32
  }
}

</mosaic_0001>

<llo_original>
// kernel: tpu_custom_call.1
$region0: #{tpu_custom_call.1}
  #allocation0 [shape = 'u32[]', space=smem, size = 0x4, offset = 0x4, fixed_abs, tag = 'smem constant byte address 0x4 - core index']
  #allocation1 [shape = 'u32[144,128]{1,0:T(1,128)}', space=vmem, size = 0x12000, scoped, tag = 'internal scratch']
  %s0 = inlined_call_operand.vmem [shape: f32[8,1], index: 0, kind: input, shape index: {}]
  %s1 = inlined_call_operand.vmem [shape: f32[8,1], index: 1, kind: input, shape index: {}]
  %s2 = inlined_call_operand.vmem [shape: f32[8,256], index: 2, kind: input, shape index: {}]
  %s3 = inlined_call_operand.hbm [shape: f32[8,256], index: 3, kind: output, shape index: {}]
  %s4 = sld [smem:[#allocation0]]
  $region22: #{tpu_custom_call.1} parent=0
    _
  %s6 = ssub.s32 1, %s4
  %s7 = scalar_select 0, %s6, %s4
  $region1: #{tpu_custom_call.1} parent=0
    #allocation2 [shape = 'u8[8192]{0}', space=vmem, size = 0x2000, scoped, tag = 'output window, operand 0, single buffered']
    #allocation3 [shape = 's32[1]{0}', space=sflag, size = 0x4, scoped, tag = 'scoped memory for tpu_custom_call.1']
    %8 = vsyncpa [#allocation3], 0
    // Predicated region
    $region2: #{tpu_custom_call.1} parent=1 // pred_check
      _
    $region3: #{tpu_custom_call.1} parent=1 // pred_check_branch
      %10 = sbr.rel (0) target = $region5
    $region4: #{tpu_custom_call.1} parent=1 // pred_region
      _
    $region5: #{tpu_custom_call.1} parent=1 // pred_fallthru
      _
    // Predicated region
    $region6: #{tpu_custom_call.1} parent=1 // pred_check
      _
    $region7: #{tpu_custom_call.1} parent=1 // pred_check_branch
      %12 = sbr.rel (0) target = $region9
    $region8: #{tpu_custom_call.1} parent=1 // pred_region
      _
    $region9: #{tpu_custom_call.1} parent=1 // pred_fallthru
      _
    // Predicated region
    $region10: #{tpu_custom_call.1} parent=1 // pred_check
      _
    $region11: #{tpu_custom_call.1} parent=1 // pred_check_branch
      %14 = sbr.rel (0) target = $region13
    $region12: #{tpu_custom_call.1} parent=1 // pred_region
      _
    $region13: #{tpu_custom_call.1} parent=1 // pred_fallthru
      _
    %v15 = vld [vmem:[%s2] sm:$0xff]
    %v16 = vld [vmem:[%s2 + $0x8] sm:$0xff]
    %v17 = vld [vmem:[%s0] sm:$0xff]
    %19 = vset.pattern.permute.xlu0 0
    %20 = vperm.xlu0 %19, %v17
    %v21 = vpop.permute.xlu0 %20
    %v23 = vmul.f32 %v15, %v21
    %v24 = vmul.f32 %v16, %v21
    %v25 = vld [vmem:[%s1] sm:$0xff]
    %27 = vset.pattern.permute.xlu0 0
    %28 = vperm.xlu0 %27, %v25
    %v29 = vpop.permute.xlu0 %28
    %v31 = vadd.f32 %v23, %v29
    %v32 = vadd.f32 %v24, %v29
    %33 = vst [vmem:[#allocation2] sm:$0xff] %v31
    %34 = vst [vmem:[#allocation2 + $0x8] sm:$0xff] %v32
    // Predicated region
    $region14: #{tpu_custom_call.1} parent=1 // pred_check
      _
    $region15: #{tpu_custom_call.1} parent=1 // pred_check_branch
      %36 = sbr.rel (0) target = $region17
    $region16: #{tpu_custom_call.1} parent=1 // pred_region
      %s38 = ssub.s32 256, 256
      %39 = vsyncadd [#allocation3], %s38
      %s41 = sshll.u32 [#allocation2], 4
      %s42 = int_to_ptr.vmem [resolvable:$true] %s41
      %44 = dma.vmem_to_hbm [thread:$0]  %s42, 256, %s3, [#allocation3]
    $region17: #{tpu_custom_call.1} parent=1 // pred_fallthru
      _
    // Predicated region
    $region18: #{tpu_custom_call.1} parent=1 // pred_check
      _
    $region19: #{tpu_custom_call.1} parent=1 // pred_check_branch
      %46 = sbr.rel (0) target = $region21
    $region20: #{tpu_custom_call.1} parent=1 // pred_region
      %47 = dma.done [#allocation3], 256
    $region21: #{tpu_custom_call.1} parent=1 // pred_fallthru
      _
    %48 = vsyncpa [#allocation3], 1

</llo_original>
